<compile_context>
chip_gen: v7x
topology: tpu7x:2x2x1
jax: 0.10.0
libtpu: 0.0.40
codegen_flags: <defaults>
</compile_context>

<pallas_src>
import functools

import jax
import jax.numpy as jnp
from jax.experimental import pallas as pl
from jax.experimental.pallas import tpu as pltpu


def _round_up(n, m):
    return ((n + m - 1) // m) * m


def _bias_layout(out_size, action_size):
    """Lane offsets of each segment inside the packed f32 bias/vector slab."""
    out_pad = _round_up(out_size, 128)        # padded extractor width
    pol_width = _round_up(action_size, 128)   # lane-dense policy output width
    o_be = 0                                  # extractor bias        (out_pad)
    o_pv1 = out_pad                           # bp1 || bv1            (512)
    o_p2 = o_pv1 + 512                        # bp2                   (256)
    o_v2 = o_p2 + 256                         # bv2                   (256)
    o_wv = o_v2 + 256                         # value_fc weight row   (256)
    o_out = o_wv + 256                        # policy_fc bias        (pol_width)
    o_bv = o_out + pol_width                  # value_fc bias @ lane0 (128)
    total = o_bv + 128
    return out_pad, pol_width, (o_be, o_pv1, o_p2, o_v2, o_wv, o_out, o_bv), total


# ---------------------------------------------------------------------------
# Pallas kernel: entire ActorCriticNetwork.forward hot path.
#   4 MXU matmuls (extractor, fused policy_fc1||value_fc1, policy_fc2,
#   value_fc2) + 1 small policy-head matmul + VPU/XLU value head.
# ---------------------------------------------------------------------------
def _make_kernel(out_pad, pol_width, offs):
    o_be, o_pv1, o_p2, o_v2, o_wv, o_out, o_bv = offs
    f32, bf16 = jnp.float32, jnp.bfloat16

    def kernel(x_ref, wext_ref, wpv1_ref, w2_ref, wout_ref, bias_ref,
               pol_ref, val_ref):
        relu = lambda v: jnp.maximum(v, 0.0)

        # cast inside the kernel: no separate wrapper-side convert/pad pass
        x = x_ref[...].astype(bf16)                               # (Bt, obs)

        # extractor: latent = relu(x @ We + be)   (out_size padded to 128 lanes)
        latent = relu(
            jnp.dot(x, wext_ref[...], preferred_element_type=f32)
            + bias_ref[:, o_be:o_be + out_pad]
        ).astype(bf16)                                            # (Bt, out_pad)

        # fused policy_fc1 || value_fc1 (same input -> one 512-wide matmul)
        h1 = relu(
            jnp.dot(latent, wpv1_ref[...], preferred_element_type=f32)
            + bias_ref[:, o_pv1:o_pv1 + 512]
        )                                                         # (Bt, 512) f32
        hp = h1[:, 0:256].astype(bf16)
        hv = h1[:, 256:512].astype(bf16)

        # second layers (different inputs -> two matmuls; weights share a slab)
        hp2 = relu(
            jnp.dot(hp, w2_ref[0:256, :], preferred_element_type=f32)
            + bias_ref[:, o_p2:o_p2 + 256]
        )                                                         # (Bt, 256) f32
        hv2 = relu(
            jnp.dot(hv, w2_ref[256:512, :], preferred_element_type=f32)
            + bias_ref[:, o_v2:o_v2 + 256]
        )                                                         # (Bt, 256) f32

        # policy head (MXU): lane-dense 128-wide output, stored bf16.
        pol = (
            jnp.dot(hp2.astype(bf16), wout_ref[...], preferred_element_type=f32)
            + bias_ref[:, o_out:o_out + pol_width]
        )
        pol_ref[...] = pol.astype(bf16)

        # value head: f32 VPU multiply + XLU lane-reduce (no MXU, no precision
        # loss from a bf16 cast).
        wv_row = bias_ref[:, o_wv:o_wv + 256]                     # (1, 256) f32
        val = (jnp.sum(hv2 * wv_row, axis=-1, keepdims=True)
               + bias_ref[:, o_bv:o_bv + 1])                      # (Bt, 1) f32
        val_ref[...] = jnp.broadcast_to(val, val_ref.shape)       # (Bt, 8)

    return kernel


# ---------------------------------------------------------------------------
# Host-side packing of the per-layer parameters into the fused kernel slabs.
# ---------------------------------------------------------------------------
def pack_params(p, action_size):
    f32, bf16 = jnp.float32, jnp.bfloat16
    obs_dim, out_size = p["we"].shape
    out_pad, pol_width, offs, total = _bias_layout(out_size, action_size)
    o_be, o_pv1, o_p2, o_v2, o_wv, o_out, o_bv = offs

    w_ext = jnp.zeros((obs_dim, out_pad), f32)
    w_ext = w_ext.at[:, :out_size].set(p["we"]).astype(bf16)           # (obs, 128)

    w_pv1 = jnp.zeros((out_pad, 512), f32)
    w_pv1 = w_pv1.at[:out_size, 0:256].set(p["wp1"])
    w_pv1 = w_pv1.at[:out_size, 256:512].set(p["wv1"]).astype(bf16)    # (128, 512)

    w_2 = jnp.concatenate([p["wp2"], p["wv2"]], axis=0).astype(bf16)   # (512, 256)

    w_out = jnp.zeros((256, pol_width), f32)
    w_out = w_out.at[:, :action_size].set(p["wp"]).astype(bf16)        # (256, 128)

    bias = jnp.zeros((1, total), f32)
    bias = bias.at[:, o_be:o_be + out_size].set(p["be"])
    bias = bias.at[:, o_pv1:o_pv1 + 256].set(p["bp1"])
    bias = bias.at[:, o_pv1 + 256:o_pv1 + 512].set(p["bv1"])
    bias = bias.at[:, o_p2:o_p2 + 256].set(p["bp2"])
    bias = bias.at[:, o_v2:o_v2 + 256].set(p["bv2"])
    bias = bias.at[:, o_wv:o_wv + 256].set(p["wv"][:, 0][None, :])     # value_fc W
    bias = bias.at[:, o_out:o_out + action_size].set(p["bp"])
    bias = bias.at[:, o_bv].set(p["bv"][0, 0])                         # value_fc b

    return dict(w_ext=w_ext, w_pv1=w_pv1, w_2=w_2, w_out=w_out, bias=bias)


@functools.partial(jax.jit, static_argnames=("out_size", "action_size", "block_b"))
def actor_critic_forward(x, packed, *, out_size, action_size, block_b=2048):
    """ActorCriticNetwork.forward -> (value[B], policy[B, action_size])."""
    B, obs_dim = x.shape
    out_pad, pol_width, offs, bias_width = _bias_layout(out_size, action_size)

    # Batch tile: >=2 steps for B>16 (v7x uses both TensorCores), >=4 steps for
    # large B (keeps input/output DMA overlapped), capped at block_b rows.
    # Rounded to 16 rows (natural bf16 sublane pack).
    if B <= 16:
        bt = _round_up(B, 16)
    elif B <= 2 * block_b:
        bt = _round_up(pl.cdiv(B, 2), 16)
    elif B <= 4 * block_b:
        bt = _round_up(pl.cdiv(B, 4), 16)
    else:
        bt = block_b
    b_pad = _round_up(B, bt)
    x_p = x if b_pad == B else jnp.pad(x, ((0, b_pad - B), (0, 0)))

    kernel = _make_kernel(out_pad, pol_width, offs)

    # ~467 KFLOP / row of MXU work with the padded shapes.
    flops = 2 * b_pad * (obs_dim * out_pad + out_pad * 512
                         + 2 * 256 * 256 + 256 * pol_width + 256)
    param_bytes = sum(int(v.size) * v.dtype.itemsize for v in packed.values())
    bytes_accessed = (b_pad * obs_dim * x.dtype.itemsize
                      + b_pad * pol_width * 2 + b_pad * 8 * 4 + param_bytes)

    pol, val = pl.pallas_call(
        kernel,
        out_shape=(
            jax.ShapeDtypeStruct((b_pad, pol_width), jnp.bfloat16),  # policy slab
            jax.ShapeDtypeStruct((b_pad, 8), jnp.float32),           # value column
        ),
        grid=(b_pad // bt,),
        in_specs=[
            pl.BlockSpec((bt, obs_dim), lambda i: (i, 0)),           # x tile / step
            pl.BlockSpec((obs_dim, out_pad), lambda i: (0, 0)),      # weights resident
            pl.BlockSpec((out_pad, 512), lambda i: (0, 0)),
            pl.BlockSpec((512, 256), lambda i: (0, 0)),
            pl.BlockSpec((256, pol_width), lambda i: (0, 0)),
            pl.BlockSpec((1, bias_width), lambda i: (0, 0)),
        ],
        out_specs=(
            pl.BlockSpec((bt, pol_width), lambda i: (i, 0)),
            pl.BlockSpec((bt, 8), lambda i: (i, 0)),
        ),
        compiler_params=pltpu.CompilerParams(
            dimension_semantics=("parallel",),
            # larger-than-default scoped VMEM so the f32 intermediates at
            # bt=2048 fit on v5e (16 MiB default); well below every chip's
            # physical VMEM.
            vmem_limit_bytes=48 * 1024 * 1024),
        cost_estimate=pl.CostEstimate(
            flops=flops, transcendentals=0, bytes_accessed=bytes_accessed),
    )(x_p, packed["w_ext"], packed["w_pv1"], packed["w_2"],
      packed["w_out"], packed["bias"])

    # Consumers that tolerate a padded slab can take `pol` / `val` directly and
    # skip this slice pass entirely.
    policy = pol[:B, :action_size].astype(jnp.float32)
    value = val[:B, 0]                      # matches PyTorch value.squeeze(dim=1)
    return value, policy


# ---------------------------------------------------------------------------
# Deterministic parameter construction (synthetic, shapes from __init__).
# ---------------------------------------------------------------------------
def make_params(key, obs_dim, out_size, action_size):
    ks = jax.random.split(key, 14)

    def linear(kw, kb, fan_in, fan_out, scale=None):
        if scale is None:
            scale = 1.0 / jnp.sqrt(jnp.float32(fan_in))
        w = jax.random.normal(kw, (fan_in, fan_out), jnp.float32) * scale
        b = jax.random.normal(kb, (1, fan_out), jnp.float32) * 0.01
        return w, b

    we, be = linear(ks[0], ks[1], obs_dim, out_size)          # extractor
    wp1, bp1 = linear(ks[2], ks[3], out_size, 256)            # policy_fc1
    wp2, bp2 = linear(ks[4], ks[5], 256, 256)                 # policy_fc2
    wv1, bv1 = linear(ks[6], ks[7], out_size, 256)            # value_fc1
    wv2, bv2 = linear(ks[8], ks[9], 256, 256)                 # value_fc2
    wv, bv = linear(ks[10], ks[11], 256, 1)                   # value_fc
    # policy_fc: xavier_normal_(gain=0.01) -> std = 0.01 * sqrt(2/(fan_in+fan_out))
    xav = 0.01 * jnp.sqrt(2.0 / (256 + action_size))
    wp, bp = linear(ks[12], ks[13], 256, action_size, scale=xav)

    return dict(we=we, be=be, wp1=wp1, bp1=bp1, wp2=wp2, bp2=bp2,
                wp=wp, bp=bp, wv1=wv1, bv1=bv1, wv2=wv2, bv2=bv2,
                wv=wv, bv=bv)


def reference_forward_f32(x, p):
    relu = lambda v: jnp.maximum(v, 0.0)
    latent = relu(x @ p["we"] + p["be"])
    h = relu(latent @ p["wp1"] + p["bp1"])
    h = relu(h @ p["wp2"] + p["bp2"])
    policy = h @ p["wp"] + p["bp"]
    h = relu(latent @ p["wv1"] + p["bv1"])
    h = relu(h @ p["wv2"] + p["bv2"])
    value = h @ p["wv"] + p["bv"]
    return value[:, 0], policy


def reference_forward_kernel_dtypes(x, p):
    # Emulates the kernel's exact dtype flow: bf16 matmul operands with f32
    # accumulation, f32 bias-add + ReLU, bf16 policy writeback, f32 value head.
    bf, f32 = jnp.bfloat16, jnp.float32
    dot = lambda a, b: jnp.dot(a.astype(bf), b.astype(bf), preferred_element_type=f32)
    relu = lambda v: jnp.maximum(v, 0.0)
    latent = relu(dot(x, p["we"]) + p["be"])
    hp = relu(dot(latent, p["wp1"]) + p["bp1"])
    hp = relu(dot(hp, p["wp2"]) + p["bp2"])
    policy = (dot(hp, p["wp"]) + p["bp"]).astype(bf).astype(f32)
    hv = relu(dot(latent, p["wv1"]) + p["bv1"])
    hv = relu(dot(hv, p["wv2"]) + p["bv2"])
    value = (hv @ p["wv"] + p["bv"])[:, 0]        # f32 VPU/XLU path in the kernel
    return value, policy


if __name__ == "__main__":
    B, OBS_DIM, OUT_SIZE, ACTION_SIZE = 4, 32, 64, 6   # action_type='continuous'
    # TODO(synk): the abstract `extractor` is realized as Linear+ReLU; get_dist /
    # sampling (tanh_normal, Categorical) and detach_value (autodiff-only) are
    # host-side logic and are not kernelized.

    key = jax.random.PRNGKey(0)
    kx, kp = jax.random.split(key)
    x = jax.random.normal(kx, (B, OBS_DIM), jnp.float32)
    params = make_params(kp, OBS_DIM, OUT_SIZE, ACTION_SIZE)
    packed = pack_params(params, ACTION_SIZE)

    value, policy = actor_critic_forward(
        x, packed, out_size=OUT_SIZE, action_size=ACTION_SIZE)
    value = jax.block_until_ready(value)
    policy = jax.block_until_ready(policy)

    assert value.shape == (B,)
    assert policy.shape == (B, ACTION_SIZE)

    # exact-path check against a reference with the same cast points
    v_k, p_k = reference_forward_kernel_dtypes(x, params)
    assert jnp.allclose(value, v_k, atol=2e-3, rtol=2e-3)
    assert jnp.allclose(policy, p_k, atol=2e-3, rtol=2e-3)

    # sanity check against the pure-f32 PyTorch-equivalent math (bf16 tolerance)
    v_f32, p_f32 = reference_forward_f32(x, params)
    assert jnp.allclose(value, v_f32, atol=5e-2, rtol=5e-2)
    assert jnp.allclose(policy, p_f32, atol=5e-2, rtol=5e-2)

    print("KERNEL_OK")
</pallas_src>

<mosaic_0001>
module attributes {stable_mosaic.version = 11 : i64} {
  func.func @kernel(%arg0: i32, %arg1: memref<16x32xf32, #tpu.memory_space<vmem>>, %arg2: memref<32x128xbf16, #tpu.memory_space<vmem>>, %arg3: memref<128x512xbf16, #tpu.memory_space<vmem>>, %arg4: memref<512x256xbf16, #tpu.memory_space<vmem>>, %arg5: memref<256x128xbf16, #tpu.memory_space<vmem>>, %arg6: memref<1x1664xf32, #tpu.memory_space<vmem>>, %arg7: memref<16x128xbf16, #tpu.memory_space<vmem>>, %arg8: memref<16x8xf32, #tpu.memory_space<vmem>>) attributes {dimension_semantics = [#tpu.dimension_semantics<parallel>], iteration_bounds = array<i64: 1>, scalar_prefetch = 0 : i64, scratch_operands = 0 : i64, tpu.core_type = #tpu.core_type<tc>, window_params = [{transform_indices = @transform_0, window_bounds = array<i64: 16, 32>}, {pipeline_mode = #tpu.pipeline_mode<synchronous>, transform_indices = @transform_1, window_bounds = array<i64: 32, 128>}, {pipeline_mode = #tpu.pipeline_mode<synchronous>, transform_indices = @transform_2, window_bounds = array<i64: 128, 512>}, {pipeline_mode = #tpu.pipeline_mode<synchronous>, transform_indices = @transform_3, window_bounds = array<i64: 512, 256>}, {pipeline_mode = #tpu.pipeline_mode<synchronous>, transform_indices = @transform_4, window_bounds = array<i64: 256, 128>}, {pipeline_mode = #tpu.pipeline_mode<synchronous>, transform_indices = @transform_5, window_bounds = array<i64: 1, 1664>}, {transform_indices = @transform_6, window_bounds = array<i64: 16, 128>}, {transform_indices = @transform_7, window_bounds = array<i64: 16, 8>}]} {
    %c0 = arith.constant 0 : index
    %c0_0 = arith.constant 0 : index
    %0 = vector.load %arg1[%c0, %c0_0] : memref<16x32xf32, #tpu.memory_space<vmem>>, vector<16x32xf32>
    %1 = arith.truncf %0 : vector<16x32xf32> to vector<16x32xbf16>
    %c0_1 = arith.constant 0 : index
    %c0_2 = arith.constant 0 : index
    %2 = vector.load %arg2[%c0_1, %c0_2] : memref<32x128xbf16, #tpu.memory_space<vmem>>, vector<32x128xbf16>
    %cst = arith.constant dense<0.000000e+00> : vector<16x128xf32>
    %3 = tpu.matmul %1, %2, %cst {dimension_numbers = #tpu.dot_dimension_numbers<[1], [0], [0], [1], [0, 0, 1, 1], [], []>} : vector<16x32xbf16>, vector<32x128xbf16>, vector<16x128xf32> -> vector<16x128xf32>
    %c0_3 = arith.constant 0 : index
    %c0_4 = arith.constant 0 : index
    %4 = vector.load %arg6[%c0_3, %c0_4] : memref<1x1664xf32, #tpu.memory_space<vmem>>, vector<1x128xf32>
    %5 = vector.broadcast %4 : vector<1x128xf32> to vector<16x128xf32>
    %6 = arith.addf %3, %5 : vector<16x128xf32>
    %cst_5 = arith.constant 0.000000e+00 : f32
    %7 = vector.broadcast %cst_5 : f32 to vector<16x128xf32>
    %8 = arith.maximumf %6, %7 : vector<16x128xf32>
    %9 = arith.truncf %8 : vector<16x128xf32> to vector<16x128xbf16>
    %c0_6 = arith.constant 0 : index
    %c0_7 = arith.constant 0 : index
    %10 = vector.load %arg3[%c0_6, %c0_7] : memref<128x512xbf16, #tpu.memory_space<vmem>>, vector<128x512xbf16>
    %cst_8 = arith.constant dense<0.000000e+00> : vector<16x512xf32>
    %11 = tpu.matmul %9, %10, %cst_8 {dimension_numbers = #tpu.dot_dimension_numbers<[1], [0], [0], [1], [0, 0, 1, 1], [], []>} : vector<16x128xbf16>, vector<128x512xbf16>, vector<16x512xf32> -> vector<16x512xf32>
    %c0_9 = arith.constant 0 : index
    %c128 = arith.constant 128 : index
    %12 = vector.load %arg6[%c0_9, %c128] : memref<1x1664xf32, #tpu.memory_space<vmem>>, vector<1x512xf32>
    %13 = vector.broadcast %12 : vector<1x512xf32> to vector<16x512xf32>
    %14 = arith.addf %11, %13 : vector<16x512xf32>
    %cst_10 = arith.constant 0.000000e+00 : f32
    %15 = vector.broadcast %cst_10 : f32 to vector<16x512xf32>
    %16 = arith.maximumf %14, %15 : vector<16x512xf32>
    %17 = vector.extract_strided_slice %16 {offsets = [0, 0], sizes = [16, 256], strides = [1, 1]} : vector<16x512xf32> to vector<16x256xf32>
    %18 = arith.truncf %17 : vector<16x256xf32> to vector<16x256xbf16>
    %19 = vector.extract_strided_slice %16 {offsets = [0, 256], sizes = [16, 256], strides = [1, 1]} : vector<16x512xf32> to vector<16x256xf32>
    %20 = arith.truncf %19 : vector<16x256xf32> to vector<16x256xbf16>
    %c0_11 = arith.constant 0 : index
    %c0_12 = arith.constant 0 : index
    %21 = vector.load %arg4[%c0_11, %c0_12] : memref<512x256xbf16, #tpu.memory_space<vmem>>, vector<256x256xbf16>
    %cst_13 = arith.constant dense<0.000000e+00> : vector<16x256xf32>
    %22 = tpu.matmul %18, %21, %cst_13 {dimension_numbers = #tpu.dot_dimension_numbers<[1], [0], [0], [1], [0, 0, 1, 1], [], []>} : vector<16x256xbf16>, vector<256x256xbf16>, vector<16x256xf32> -> vector<16x256xf32>
    %c0_14 = arith.constant 0 : index
    %c640 = arith.constant 640 : index
    %23 = vector.load %arg6[%c0_14, %c640] : memref<1x1664xf32, #tpu.memory_space<vmem>>, vector<1x256xf32>
    %24 = vector.broadcast %23 : vector<1x256xf32> to vector<16x256xf32>
    %25 = arith.addf %22, %24 : vector<16x256xf32>
    %cst_15 = arith.constant 0.000000e+00 : f32
    %26 = vector.broadcast %cst_15 : f32 to vector<16x256xf32>
    %27 = arith.maximumf %25, %26 : vector<16x256xf32>
    %c256 = arith.constant 256 : index
    %c0_16 = arith.constant 0 : index
    %28 = vector.load %arg4[%c256, %c0_16] : memref<512x256xbf16, #tpu.memory_space<vmem>>, vector<256x256xbf16>
    %cst_17 = arith.constant dense<0.000000e+00> : vector<16x256xf32>
    %29 = tpu.matmul %20, %28, %cst_17 {dimension_numbers = #tpu.dot_dimension_numbers<[1], [0], [0], [1], [0, 0, 1, 1], [], []>} : vector<16x256xbf16>, vector<256x256xbf16>, vector<16x256xf32> -> vector<16x256xf32>
    %c0_18 = arith.constant 0 : index
    %c896 = arith.constant 896 : index
    %30 = vector.load %arg6[%c0_18, %c896] : memref<1x1664xf32, #tpu.memory_space<vmem>>, vector<1x256xf32>
    %31 = vector.broadcast %30 : vector<1x256xf32> to vector<16x256xf32>
    %32 = arith.addf %29, %31 : vector<16x256xf32>
    %cst_19 = arith.constant 0.000000e+00 : f32
    %33 = vector.broadcast %cst_19 : f32 to vector<16x256xf32>
    %34 = arith.maximumf %32, %33 : vector<16x256xf32>
    %35 = arith.truncf %27 : vector<16x256xf32> to vector<16x256xbf16>
    %c0_20 = arith.constant 0 : index
    %c0_21 = arith.constant 0 : index
    %36 = vector.load %arg5[%c0_20, %c0_21] : memref<256x128xbf16, #tpu.memory_space<vmem>>, vector<256x128xbf16>
    %cst_22 = arith.constant dense<0.000000e+00> : vector<16x128xf32>
    %37 = tpu.matmul %35, %36, %cst_22 {dimension_numbers = #tpu.dot_dimension_numbers<[1], [0], [0], [1], [0, 0, 1, 1], [], []>} : vector<16x256xbf16>, vector<256x128xbf16>, vector<16x128xf32> -> vector<16x128xf32>
    %c0_23 = arith.constant 0 : index
    %c1408 = arith.constant 1408 : index
    %38 = vector.load %arg6[%c0_23, %c1408] : memref<1x1664xf32, #tpu.memory_space<vmem>>, vector<1x128xf32>
    %39 = vector.broadcast %38 : vector<1x128xf32> to vector<16x128xf32>
    %40 = arith.addf %37, %39 : vector<16x128xf32>
    %41 = arith.truncf %40 : vector<16x128xf32> to vector<16x128xbf16>
    %c0_24 = arith.constant 0 : index
    %c0_25 = arith.constant 0 : index
    %42 = vector.load %arg7[%c0_24, %c0_25] : memref<16x128xbf16, #tpu.memory_space<vmem>>, vector<16x128xbf16>
    tpu.vector_store %arg7[%c0_24, %c0_25], %41 {strides = array<i32>} : memref<16x128xbf16, #tpu.memory_space<vmem>>, vector<16x128xbf16>,
    %c0_26 = arith.constant 0 : index
    %c1152 = arith.constant 1152 : index
    %43 = vector.load %arg6[%c0_26, %c1152] : memref<1x1664xf32, #tpu.memory_space<vmem>>, vector<1x256xf32>
    %44 = vector.broadcast %43 : vector<1x256xf32> to vector<16x256xf32>
    %45 = arith.mulf %34, %44 : vector<16x256xf32>
    %cst_27 = arith.constant dense<0.000000e+00> : vector<16xf32>
    %46 = vector.multi_reduction <add>, %45, %cst_27 [1] : vector<16x256xf32> to vector<16xf32>
    %47 = vector.shape_cast %46 : vector<16xf32> to vector<16x1xf32>
    %c0_28 = arith.constant 0 : index
    %c1536 = arith.constant 1536 : index
    %48 = vector.load %arg6[%c0_28, %c1536] : memref<1x1664xf32, #tpu.memory_space<vmem>>, vector<1x1xf32>
    %49 = vector.broadcast %48 : vector<1x1xf32> to vector<16x1xf32>
    %50 = arith.addf %47, %49 : vector<16x1xf32>
    %51 = vector.shape_cast %50 : vector<16x1xf32> to vector<16x1xf32>
    %52 = vector.broadcast %51 : vector<16x1xf32> to vector<16x8xf32>
    %c0_29 = arith.constant 0 : index
    %c0_30 = arith.constant 0 : index
    %53 = vector.load %arg8[%c0_29, %c0_30] : memref<16x8xf32, #tpu.memory_space<vmem>>, vector<16x8xf32>
    tpu.vector_store %arg8[%c0_29, %c0_30], %52 {strides = array<i32>} : memref<16x8xf32, #tpu.memory_space<vmem>>, vector<16x8xf32>,
    return
  }
  func.func @transform_0(%arg0: i32) -> (i32, i32) {
    %c0_i32 = arith.constant 0 : i32
    %c0_i32_0 = arith.constant 0 : i32
    return %arg0, %c0_i32 : i32, i32
  }
  func.func @transform_1(%arg0: i32) -> (i32, i32) {
    %c0_i32 = arith.constant 0 : i32
    %c0_i32_0 = arith.constant 0 : i32
    %c0_i32_1 = arith.constant 0 : i32
    return %c0_i32, %c0_i32_0 : i32, i32
  }
  func.func @transform_2(%arg0: i32) -> (i32, i32) {
    %c0_i32 = arith.constant 0 : i32
    %c0_i32_0 = arith.constant 0 : i32
    %c0_i32_1 = arith.constant 0 : i32
    return %c0_i32, %c0_i32_0 : i32, i32
  }
  func.func @transform_3(%arg0: i32) -> (i32, i32) {
    %c0_i32 = arith.constant 0 : i32
    %c0_i32_0 = arith.constant 0 : i32
    %c0_i32_1 = arith.constant 0 : i32
    return %c0_i32, %c0_i32_0 : i32, i32
  }
  func.func @transform_4(%arg0: i32) -> (i32, i32) {
    %c0_i32 = arith.constant 0 : i32
    %c0_i32_0 = arith.constant 0 : i32
    %c0_i32_1 = arith.constant 0 : i32
    return %c0_i32, %c0_i32_0 : i32, i32
  }
  func.func @transform_5(%arg0: i32) -> (i32, i32) {
    %c0_i32 = arith.constant 0 : i32
    %c0_i32_0 = arith.constant 0 : i32
    %c0_i32_1 = arith.constant 0 : i32
    return %c0_i32, %c0_i32_0 : i32, i32
  }
  func.func @transform_6(%arg0: i32) -> (i32, i32) {
    %c0_i32 = arith.constant 0 : i32
    %c0_i32_0 = arith.constant 0 : i32
    return %arg0, %c0_i32 : i32, i32
  }
  func.func @transform_7(%arg0: i32) -> (i32, i32) {
    %c0_i32 = arith.constant 0 : i32
    %c0_i32_0 = arith.constant 0 : i32
    return %arg0, %c0_i32 : i32, i32
  }
}

</mosaic_0001>

<llo_original>
// kernel: actor_critic_forward.1
$region0: #{actor_critic_forward.1}
  #allocation0 [shape = 'u32[]', space=smem, size = 0x4, offset = 0x4, fixed_abs, tag = 'smem constant byte address 0x4 - core index']
  #allocation1 [shape = 'u32[144,128]{1,0:T(1,128)}', space=vmem, size = 0x12000, scoped, tag = 'internal scratch']
  %s0 = inlined_call_operand.vmem [shape: f32[16,32], index: 0, kind: input, shape index: {}]
  %s1 = inlined_call_operand.vmem [shape: bf16[32,128], index: 1, kind: input, shape index: {}]
  %s2 = inlined_call_operand.hbm [shape: bf16[128,512], index: 2, kind: input, shape index: {}]
  %s3 = inlined_call_operand.hbm [shape: bf16[512,256], index: 3, kind: input, shape index: {}]
  %s4 = inlined_call_operand.hbm [shape: bf16[256,128], index: 4, kind: input, shape index: {}]
  %s5 = inlined_call_operand.vmem [shape: f32[1,1664], index: 5, kind: input, shape index: {}]
  %s6 = inlined_call_operand.vmem [shape: bf16[16,128], index: 6, kind: output, shape index: {0}]
  %s7 = inlined_call_operand.vmem [shape: f32[16,8], index: 7, kind: output, shape index: {1}]
  %8 = xla_tuple %s6, %s7
  %s9 = sld [smem:[#allocation0]]
  $region54: #{actor_critic_forward.1} parent=0
    _
  %s11 = ssub.s32 1, %s9
  %s12 = scalar_select 0, %s11, %s9
  $region1: #{actor_critic_forward.1} parent=0
    #allocation2 [shape = 'u8[131072]{0}', space=vmem, size = 0x20000, scoped, tag = 'input window, operand 2, single buffered']
    #allocation3 [shape = 's32[1]{0}', space=sflag, size = 0x4, scoped, tag = 'scoped memory for actor_critic_forward.1']
    #allocation4 [shape = 'u8[262144]{0}', space=vmem, size = 0x40000, scoped, tag = 'input window, operand 3, single buffered']
    #allocation5 [shape = 's32[1]{0}', space=sflag, size = 0x4, scoped, tag = 'scoped memory for actor_critic_forward.1']
    #allocation6 [shape = 'u8[65536]{0}', space=vmem, size = 0x10000, scoped, tag = 'input window, operand 4, single buffered']
    %13 = vsyncpa [#allocation3], 0
    %14 = vsyncpa [#allocation5], 0
    // Predicated region
    $region2: #{actor_critic_forward.1} parent=1 // pred_check
      _
    $region3: #{actor_critic_forward.1} parent=1 // pred_check_branch
      %16 = sbr.rel (0) target = $region5
    $region4: #{actor_critic_forward.1} parent=1 // pred_region
      _
    $region5: #{actor_critic_forward.1} parent=1 // pred_fallthru
      _
    // Predicated region
    $region6: #{actor_critic_forward.1} parent=1 // pred_check
      _
    $region7: #{actor_critic_forward.1} parent=1 // pred_check_branch
      %18 = sbr.rel (0) target = $region9
    $region8: #{actor_critic_forward.1} parent=1 // pred_region
      _
    $region9: #{actor_critic_forward.1} parent=1 // pred_fallthru
      _
    // Predicated region
    $region10: #{actor_critic_forward.1} parent=1 // pred_check
      _
    $region11: #{actor_critic_forward.1} parent=1 // pred_check_branch
      %20 = sbr.rel (0) target = $region13
    $region12: #{actor_critic_forward.1} parent=1 // pred_region
      %s22 = ssub.s32 4096, 4096
      %23 = vsyncadd [#allocation3], %s22
      %s24 = sshll.u32 [#allocation2], 4
      %s25 = int_to_ptr.vmem [resolvable:$true] %s24
      %30 = dma.hbm_to_vmem [thread:$0]  %s2, 4096, %s25, [#allocation3], 256, 256, 16
    $region13: #{actor_critic_forward.1} parent=1 // pred_fallthru
      _
    // Predicated region
    $region14: #{actor_critic_forward.1} parent=1 // pred_check
      _
    $region15: #{actor_critic_forward.1} parent=1 // pred_check_branch
      %32 = sbr.rel (0) target = $region17
    $region16: #{actor_critic_forward.1} parent=1 // pred_region
      %s34 = ssub.s32 8192, 8192
      %35 = vsyncadd [#allocation5], %s34
      %s36 = sshll.u32 [#allocation4], 4
      %s37 = int_to_ptr.vmem [resolvable:$true] %s36
      %42 = dma.hbm_to_vmem [thread:$0]  %s3, 8192, %s37, [#allocation5], 128, 128, 8
    $region17: #{actor_critic_forward.1} parent=1 // pred_fallthru
      _
    // Predicated region
    $region18: #{actor_critic_forward.1} parent=1 // pred_check
      _
    $region19: #{actor_critic_forward.1} parent=1 // pred_check_branch
      %44 = sbr.rel (0) target = $region21
    $region20: #{actor_critic_forward.1} parent=1 // pred_region
      %s46 = ssub.s32 2048, 2048
      %47 = vsyncadd [#allocation5], %s46
      %s48 = sshll.u32 [#allocation6], 4
      %s49 = int_to_ptr.vmem [resolvable:$true] %s48
      %54 = dma.hbm_to_vmem [thread:$0]  %s4, 2048, %s49, [#allocation5], 64, 64, 4
    $region21: #{actor_critic_forward.1} parent=1 // pred_fallthru
      _
    // Predicated region
    $region22: #{actor_critic_forward.1} parent=1 // pred_check
      _
    $region23: #{actor_critic_forward.1} parent=1 // pred_check_branch
      %56 = sbr.rel (0) target = $region25
    $region24: #{actor_critic_forward.1} parent=1 // pred_region
      _
    $region25: #{actor_critic_forward.1} parent=1 // pred_fallthru
      _
    // Predicated region
    $region26: #{actor_critic_forward.1} parent=1 // pred_check
      _
    $region27: #{actor_critic_forward.1} parent=1 // pred_check_branch
      %58 = sbr.rel (0) target = $region29
    $region28: #{actor_critic_forward.1} parent=1 // pred_region
      %59 = dma.done [#allocation3], 4096
    $region29: #{actor_critic_forward.1} parent=1 // pred_fallthru
      _
    // Predicated region
    $region30: #{actor_critic_forward.1} parent=1 // pred_check
      _
    $region31: #{actor_critic_forward.1} parent=1 // pred_check_branch
      %61 = sbr.rel (0) target = $region33
    $region32: #{actor_critic_forward.1} parent=1 // pred_region
      %62 = dma.done [#allocation5], 8192
    $region33: #{actor_critic_forward.1} parent=1 // pred_fallthru
      _
    // Predicated region
    $region34: #{actor_critic_forward.1} parent=1 // pred_check
      _
    $region35: #{actor_critic_forward.1} parent=1 // pred_check_branch
      %64 = sbr.rel (0) target = $region37
    $region36: #{actor_critic_forward.1} parent=1 // pred_region
      %65 = dma.done [#allocation5], 2048
    $region37: #{actor_critic_forward.1} parent=1 // pred_fallthru
      _
    %v67 = vld [vmem:[%s0] sm:$0xff]
    %v68 = vld [vmem:[%s0 + $0x8] sm:$0xff]
    %v69 = vpack.c.bf16 %v68, %v67
    %v70 = vld [vmem:[%s1] sm:$0xf]
    %v71 = vld [vmem:[%s1 + $0x4] sm:$0xf]
    %v72 = vld [vmem:[%s1 + $0x8] sm:$0xf]
    %v73 = vld [vmem:[%s1 + $0xc] sm:$0xf]
    %v74 = vld [vmem:[%s5] sm:$0x1]
    %v76 = vlaneseq
    %v77 = vshrl.u32 %v76, 7
    %v78 = vsub.s32 0, %v77
    %v79 = vrot.slane %v74, %v78
    %v85 = vunpack.c.l.b16 %v70
    %v86 = vunpack.c.l.b16 %v71
    %v87 = vunpack.c.l.b16 %v72
    %v88 = vunpack.c.l.b16 %v73
    %v89 = vpack.c.b16 %v86, %v85
    %v90 = vpack.c.b16 %v88, %v87
    %vm93 = vcmask 261120
    %v95 = vsel %vm93, %v69, 0
    %97 = vmatprep.subr.bf16.mxu0 0
    %98 = vmatpush1.bf16.msra.mxu0 %v89
    %99 = vmatprep.subr.bf16.mxu0 0
    %100 = vmatpush1.bf16.msra.mxu0 %v90
    %101 = vmatprep.subr.bf16.mxu0 0
    %102 = vmatpush1.bf16.msra.mxu0 0
    %103 = vmatprep.subr.bf16.mxu0 0
    %104 = vmatpush1.bf16.msra.mxu0 0
    %105 = vmatprep.subr.bf16.mxu0 0
    %106 = vmatpush1.bf16.msra.mxu0 0
    %107 = vmatprep.subr.bf16.mxu0 0
    %108 = vmatpush1.bf16.msra.mxu0 0
    %109 = vmatprep.subr.bf16.mxu0 0
    %110 = vmatpush1.bf16.msra.mxu0 0
    %111 = vmatprep.subr.bf16.mxu0 0
    %112 = vmatpush1.bf16.msra.mxu0 0
    %113 = vmatprep.subr.bf16.mxu0 0
    %114 = vmatpush1.bf16.msra.mxu0 0
    %115 = vmatprep.subr.bf16.mxu0 0
    %116 = vmatpush1.bf16.msra.mxu0 0
    %117 = vmatprep.subr.bf16.mxu0 0
    %118 = vmatpush1.bf16.msra.mxu0 0
    %119 = vmatprep.subr.bf16.mxu0 0
    %120 = vmatpush1.bf16.msra.mxu0 0
    %121 = vmatprep.subr.bf16.mxu0 0
    %122 = vmatpush1.bf16.msra.mxu0 0
    %123 = vmatprep.subr.bf16.mxu0 0
    %124 = vmatpush1.bf16.msra.mxu0 0
    %125 = vmatprep.subr.bf16.mxu0 0
    %126 = vmatpush1.bf16.msra.mxu0 0
    %127 = vmatprep.subr.bf16.mxu0 0
    %128 = vmatpush1.bf16.msra.mxu0 0
    %129 = vmatprep.mubr.bf16.mxu0 0
    %130 = vmatmul.mubr.bf16.gmra.mrb[0].mxu0 %v95
    %v131 = vpop.f32.mrb[0].mxu0
    %v132 = vadd.f32 %v79, %v131
    %v133 = vpop.f32.mrb[0].mxu0
    %v134 = vpop.f32.mrb[0].mxu0
    %v135 = vadd.f32 %v79, %v134
    %v136 = vpop.f32.mrb[0].mxu0
    %137 = vdwg.mxu0
    %v138 = vmax.f32 %v132, 0.0
    %v139 = vmax.f32 %v135, 0.0
    %v140 = vpack.c.bf16 %v139, %v138
    %v141 = vld [vmem:[#allocation2] sm:$0xff]
    %v142 = vld [vmem:[#allocation2 + $0x8] sm:$0xff]
    %v143 = vld [vmem:[#allocation2 + $0x10] sm:$0xff]
    %v144 = vld [vmem:[#allocation2 + $0x18] sm:$0xff]
    %v145 = vld [vmem:[#allocation2 + $0x20] sm:$0xff]
    %v146 = vld [vmem:[#allocation2 + $0x28] sm:$0xff]
    %v147 = vld [vmem:[#allocation2 + $0x30] sm:$0xff]
    %v148 = vld [vmem:[#allocation2 + $0x38] sm:$0xff]
    %v149 = vld [vmem:[#allocation2 + $0x40] sm:$0xff]
    %v150 = vld [vmem:[#allocation2 + $0x48] sm:$0xff]
    %v151 = vld [vmem:[#allocation2 + $0x50] sm:$0xff]
    %v152 = vld [vmem:[#allocation2 + $0x58] sm:$0xff]
    %v153 = vld [vmem:[#allocation2 + $0x60] sm:$0xff]
    %v154 = vld [vmem:[#allocation2 + $0x68] sm:$0xff]
    %v155 = vld [vmem:[#allocation2 + $0x70] sm:$0xff]
    %v156 = vld [vmem:[#allocation2 + $0x78] sm:$0xff]
    %v157 = vld [vmem:[#allocation2 + $0x80] sm:$0xff]
    %v158 = vld [vmem:[#allocation2 + $0x88] sm:$0xff]
    %v159 = vld [vmem:[#allocation2 + $0x90] sm:$0xff]
    %v160 = vld [vmem:[#allocation2 + $0x98] sm:$0xff]
    %v161 = vld [vmem:[#allocation2 + $0xa0] sm:$0xff]
    %v162 = vld [vmem:[#allocation2 + $0xa8] sm:$0xff]
    %v163 = vld [vmem:[#allocation2 + $0xb0] sm:$0xff]
    %v164 = vld [vmem:[#allocation2 + $0xb8] sm:$0xff]
    %v165 = vld [vmem:[#allocation2 + $0xc0] sm:$0xff]
    %v166 = vld [vmem:[#allocation2 + $0xc8] sm:$0xff]
    %v167 = vld [vmem:[#allocation2 + $0xd0] sm:$0xff]
    %v168 = vld [vmem:[#allocation2 + $0xd8] sm:$0xff]
    %v169 = vld [vmem:[#allocation2 + $0xe0] sm:$0xff]
    %v170 = vld [vmem:[#allocation2 + $0xe8] sm:$0xff]
    %v171 = vld [vmem:[#allocation2 + $0xf0] sm:$0xff]
    %v172 = vld [vmem:[#allocation2 + $0xf8] sm:$0xff]
    %v173 = vld [vmem:[%s5 + $0x1] sm:$0xf]
    %v175 = vlaneseq
    %v176 = vshrl.u32 %v175, 7
    %v177 = vsub.s32 0, %v176
    %v178 = vrot.slane %v173, %v177
    %v179 = vlaneseq
    %v180 = vshrl.u32 %v179, 7
    %v181 = vsub.s32 1, %v180
    %v182 = vrot.slane %v173, %v181
    %v183 = vlaneseq
    %v184 = vshrl.u32 %v183, 7
    %v185 = vsub.s32 2, %v184
    %v186 = vrot.slane %v173, %v185
    %v187 = vlaneseq
    %v188 = vshrl.u32 %v187, 7
    %v189 = vsub.s32 3, %v188
    %v190 = vrot.slane %v173, %v189
    %v227 = vunpack.c.l.b16 %v141
    %v228 = vunpack.c.h.b16 %v141
    %v229 = vunpack.c.l.b16 %v142
    %v230 = vunpack.c.h.b16 %v142
    %v231 = vunpack.c.l.b16 %v143
    %v232 = vunpack.c.h.b16 %v143
    %v233 = vunpack.c.l.b16 %v144
    %v234 = vunpack.c.h.b16 %v144
    %v235 = vunpack.c.l.b16 %v145
    %v236 = vunpack.c.h.b16 %v145
    %v237 = vunpack.c.l.b16 %v146
    %v238 = vunpack.c.h.b16 %v146
    %v239 = vunpack.c.l.b16 %v147
    %v240 = vunpack.c.h.b16 %v147
    %v241 = vunpack.c.l.b16 %v148
    %v242 = vunpack.c.h.b16 %v148
    %v243 = vunpack.c.l.b16 %v149
    %v244 = vunpack.c.h.b16 %v149
    %v245 = vunpack.c.l.b16 %v150
    %v246 = vunpack.c.h.b16 %v150
    %v247 = vunpack.c.l.b16 %v151
    %v248 = vunpack.c.h.b16 %v151
    %v249 = vunpack.c.l.b16 %v152
    %v250 = vunpack.c.h.b16 %v152
    %v251 = vunpack.c.l.b16 %v153
    %v252 = vunpack.c.h.b16 %v153
    %v253 = vunpack.c.l.b16 %v154
    %v254 = vunpack.c.h.b16 %v154
    %v255 = vunpack.c.l.b16 %v155
    %v256 = vunpack.c.h.b16 %v155
    %v257 = vunpack.c.l.b16 %v156
    %v258 = vunpack.c.h.b16 %v156
    %v259 = vunpack.c.l.b16 %v157
    %v260 = vunpack.c.h.b16 %v157
    %v261 = vunpack.c.l.b16 %v158
    %v262 = vunpack.c.h.b16 %v158
    %v263 = vunpack.c.l.b16 %v159
    %v264 = vunpack.c.h.b16 %v159
    %v265 = vunpack.c.l.b16 %v160
    %v266 = vunpack.c.h.b16 %v160
    %v267 = vunpack.c.l.b16 %v161
    %v268 = vunpack.c.h.b16 %v161
    %v269 = vunpack.c.l.b16 %v162
    %v270 = vunpack.c.h.b16 %v162
    %v271 = vunpack.c.l.b16 %v163
    %v272 = vunpack.c.h.b16 %v163
    %v273 = vunpack.c.l.b16 %v164
    %v274 = vunpack.c.h.b16 %v164
    %v275 = vunpack.c.l.b16 %v165
    %v276 = vunpack.c.h.b16 %v165
    %v277 = vunpack.c.l.b16 %v166
    %v278 = vunpack.c.h.b16 %v166
    %v279 = vunpack.c.l.b16 %v167
    %v280 = vunpack.c.h.b16 %v167
    %v281 = vunpack.c.l.b16 %v168
    %v282 = vunpack.c.h.b16 %v168
    %v283 = vunpack.c.l.b16 %v169
    %v284 = vunpack.c.h.b16 %v169
    %v285 = vunpack.c.l.b16 %v170
    %v286 = vunpack.c.h.b16 %v170
    %v287 = vunpack.c.l.b16 %v171
    %v288 = vunpack.c.h.b16 %v171
    %v289 = vunpack.c.l.b16 %v172
    %v290 = vunpack.c.h.b16 %v172
    %v291 = vpack.c.b16 %v231, %v227
    %v292 = vpack.c.b16 %v232, %v228
    %v293 = vpack.c.b16 %v233, %v229
    %v294 = vpack.c.b16 %v234, %v230
    %v295 = vpack.c.b16 %v239, %v235
    %v296 = vpack.c.b16 %v240, %v236
    %v297 = vpack.c.b16 %v241, %v237
    %v298 = vpack.c.b16 %v242, %v238
    %v299 = vpack.c.b16 %v247, %v243
    %v300 = vpack.c.b16 %v248, %v244
    %v301 = vpack.c.b16 %v249, %v245
    %v302 = vpack.c.b16 %v250, %v246
    %v303 = vpack.c.b16 %v255, %v251
    %v304 = vpack.c.b16 %v256, %v252
    %v305 = vpack.c.b16 %v257, %v253
    %v306 = vpack.c.b16 %v258, %v254
    %v307 = vpack.c.b16 %v263, %v259
    %v308 = vpack.c.b16 %v264, %v260
    %v309 = vpack.c.b16 %v265, %v261
    %v310 = vpack.c.b16 %v266, %v262
    %v311 = vpack.c.b16 %v271, %v267
    %v312 = vpack.c.b16 %v272, %v268
    %v313 = vpack.c.b16 %v273, %v269
    %v314 = vpack.c.b16 %v274, %v270
    %v315 = vpack.c.b16 %v279, %v275
    %v316 = vpack.c.b16 %v280, %v276
    %v317 = vpack.c.b16 %v281, %v277
    %v318 = vpack.c.b16 %v282, %v278
    %v319 = vpack.c.b16 %v287, %v283
    %v320 = vpack.c.b16 %v288, %v284
    %v321 = vpack.c.b16 %v289, %v285
    %v322 = vpack.c.b16 %v290, %v286
    %355 = vmatprep.subr.bf16.mxu0 %v292
    %356 = vmatpush1.bf16.msra.mxu0 %v291
    %357 = vmatprep.subr.bf16.mxu0 %v296
    %358 = vmatpush1.bf16.msra.mxu0 %v295
    %359 = vmatprep.subr.bf16.mxu0 %v300
    %360 = vmatpush1.bf16.msra.mxu0 %v299
    %361 = vmatprep.subr.bf16.mxu0 %v304
    %362 = vmatpush1.bf16.msra.mxu0 %v303
    %363 = vmatprep.subr.bf16.mxu0 %v308
    %364 = vmatpush1.bf16.msra.mxu0 %v307
    %365 = vmatprep.subr.bf16.mxu0 %v312
    %366 = vmatpush1.bf16.msra.mxu0 %v311
    %367 = vmatprep.subr.bf16.mxu0 %v316
    %368 = vmatpush1.bf16.msra.mxu0 %v315
    %369 = vmatprep.subr.bf16.mxu0 %v320
    %370 = vmatpush1.bf16.msra.mxu0 %v319
    %371 = vmatprep.subr.bf16.mxu0 0
    %372 = vmatpush1.bf16.msra.mxu0 0
    %373 = vmatprep.subr.bf16.mxu0 0
    %374 = vmatpush1.bf16.msra.mxu0 0
    %375 = vmatprep.subr.bf16.mxu0 0
    %376 = vmatpush1.bf16.msra.mxu0 0
    %377 = vmatprep.subr.bf16.mxu0 0
    %378 = vmatpush1.bf16.msra.mxu0 0
    %379 = vmatprep.subr.bf16.mxu0 0
    %380 = vmatpush1.bf16.msra.mxu0 0
    %381 = vmatprep.subr.bf16.mxu0 0
    %382 = vmatpush1.bf16.msra.mxu0 0
    %383 = vmatprep.subr.bf16.mxu0 0
    %384 = vmatpush1.bf16.msra.mxu0 0
    %385 = vmatprep.subr.bf16.mxu0 0
    %386 = vmatpush1.bf16.msra.mxu0 0
    %387 = vmatprep.mubr.bf16.mxu0 0
    %388 = vmatmul.mubr.bf16.gmra.mrb[0].mxu0 %v140
    %v389 = vpop.f32.mrb[0].mxu0
    %v390 = vadd.f32 %v178, %v389
    %v391 = vpop.f32.mrb[0].mxu0
    %v392 = vadd.f32 %v182, %v391
    %v393 = vpop.f32.mrb[0].mxu0
    %v394 = vadd.f32 %v178, %v393
    %v395 = vpop.f32.mrb[0].mxu0
    %v396 = vadd.f32 %v182, %v395
    %397 = vdwg.mxu0
    %398 = vmatprep.subr.bf16.mxu0 %v294
    %399 = vmatpush1.bf16.msra.mxu0 %v293
    %400 = vmatprep.subr.bf16.mxu0 %v298
    %401 = vmatpush1.bf16.msra.mxu0 %v297
    %402 = vmatprep.subr.bf16.mxu0 %v302
    %403 = vmatpush1.bf16.msra.mxu0 %v301
    %404 = vmatprep.subr.bf16.mxu0 %v306
    %405 = vmatpush1.bf16.msra.mxu0 %v305
    %406 = vmatprep.subr.bf16.mxu0 %v310
    %407 = vmatpush1.bf16.msra.mxu0 %v309
    %408 = vmatprep.subr.bf16.mxu0 %v314
    %409 = vmatpush1.bf16.msra.mxu0 %v313
    %410 = vmatprep.subr.bf16.mxu0 %v318
    %411 = vmatpush1.bf16.msra.mxu0 %v317
    %412 = vmatprep.subr.bf16.mxu0 %v322
    %413 = vmatpush1.bf16.msra.mxu0 %v321
    %414 = vmatprep.subr.bf16.mxu0 0
    %415 = vmatpush1.bf16.msra.mxu0 0
    %416 = vmatprep.subr.bf16.mxu0 0
    %417 = vmatpush1.bf16.msra.mxu0 0
    %418 = vmatprep.subr.bf16.mxu0 0
    %419 = vmatpush1.bf16.msra.mxu0 0
    %420 = vmatprep.subr.bf16.mxu0 0
    %421 = vmatpush1.bf16.msra.mxu0 0
    %422 = vmatprep.subr.bf16.mxu0 0
    %423 = vmatpush1.bf16.msra.mxu0 0
    %424 = vmatprep.subr.bf16.mxu0 0
    %425 = vmatpush1.bf16.msra.mxu0 0
    %426 = vmatprep.subr.bf16.mxu0 0
    %427 = vmatpush1.bf16.msra.mxu0 0
    %428 = vmatprep.subr.bf16.mxu0 0
    %429 = vmatpush1.bf16.msra.mxu0 0
    %430 = vmatprep.mubr.bf16.mxu0 0
    %431 = vmatmul.mubr.bf16.gmra.mrb[0].mxu0 %v140
    %v432 = vpop.f32.mrb[0].mxu0
    %v433 = vadd.f32 %v186, %v432
    %v434 = vpop.f32.mrb[0].mxu0
    %v435 = vadd.f32 %v190, %v434
    %v436 = vpop.f32.mrb[0].mxu0
    %v437 = vadd.f32 %v186, %v436
    %v438 = vpop.f32.mrb[0].mxu0
    %v439 = vadd.f32 %v190, %v438
    %440 = vdwg.mxu0
    %v441 = vmax.f32 %v390, 0.0
    %v442 = vmax.f32 %v392, 0.0
    %v443 = vmax.f32 %v433, 0.0
    %v444 = vmax.f32 %v435, 0.0
    %v445 = vmax.f32 %v394, 0.0
    %v446 = vmax.f32 %v396, 0.0
    %v447 = vmax.f32 %v437, 0.0
    %v448 = vmax.f32 %v439, 0.0
    %v449 = vpack.c.bf16 %v445, %v441
    %v450 = vpack.c.bf16 %v446, %v442
    %v451 = vpack.c.bf16 %v447, %v443
    %v452 = vpack.c.bf16 %v448, %v444
    %v453 = vld [vmem:[#allocation4] sm:$0xff]
    %v454 = vld [vmem:[#allocation4 + $0x8] sm:$0xff]
    %v455 = vld [vmem:[#allocation4 + $0x10] sm:$0xff]
    %v456 = vld [vmem:[#allocation4 + $0x18] sm:$0xff]
    %v457 = vld [vmem:[#allocation4 + $0x20] sm:$0xff]
    %v458 = vld [vmem:[#allocation4 + $0x28] sm:$0xff]
    %v459 = vld [vmem:[#allocation4 + $0x30] sm:$0xff]
    %v460 = vld [vmem:[#allocation4 + $0x38] sm:$0xff]
    %v461 = vld [vmem:[#allocation4 + $0x40] sm:$0xff]
    %v462 = vld [vmem:[#allocation4 + $0x48] sm:$0xff]
    %v463 = vld [vmem:[#allocation4 + $0x50] sm:$0xff]
    %v464 = vld [vmem:[#allocation4 + $0x58] sm:$0xff]
    %v465 = vld [vmem:[#allocation4 + $0x60] sm:$0xff]
    %v466 = vld [vmem:[#allocation4 + $0x68] sm:$0xff]
    %v467 = vld [vmem:[#allocation4 + $0x70] sm:$0xff]
    %v468 = vld [vmem:[#allocation4 + $0x78] sm:$0xff]
    %v469 = vld [vmem:[#allocation4 + $0x80] sm:$0xff]
    %v470 = vld [vmem:[#allocation4 + $0x88] sm:$0xff]
    %v471 = vld [vmem:[#allocation4 + $0x90] sm:$0xff]
    %v472 = vld [vmem:[#allocation4 + $0x98] sm:$0xff]
    %v473 = vld [vmem:[#allocation4 + $0xa0] sm:$0xff]
    %v474 = vld [vmem:[#allocation4 + $0xa8] sm:$0xff]
    %v475 = vld [vmem:[#allocation4 + $0xb0] sm:$0xff]
    %v476 = vld [vmem:[#allocation4 + $0xb8] sm:$0xff]
    %v477 = vld [vmem:[#allocation4 + $0xc0] sm:$0xff]
    %v478 = vld [vmem:[#allocation4 + $0xc8] sm:$0xff]
    %v479 = vld [vmem:[#allocation4 + $0xd0] sm:$0xff]
    %v480 = vld [vmem:[#allocation4 + $0xd8] sm:$0xff]
    %v481 = vld [vmem:[#allocation4 + $0xe0] sm:$0xff]
    %v482 = vld [vmem:[#allocation4 + $0xe8] sm:$0xff]
    %v483 = vld [vmem:[#allocation4 + $0xf0] sm:$0xff]
    %v484 = vld [vmem:[#allocation4 + $0xf8] sm:$0xff]
    %v485 = vld [vmem:[%s5 + $0x5] sm:$0x3]
    %v487 = vlaneseq
    %v488 = vshrl.u32 %v487, 7
    %v489 = vsub.s32 0, %v488
    %v490 = vrot.slane %v485, %v489
    %v491 = vlaneseq
    %v492 = vshrl.u32 %v491, 7
    %v493 = vsub.s32 1, %v492
    %v494 = vrot.slane %v485, %v493
    %v529 = vunpack.c.l.b16 %v453
    %v530 = vunpack.c.h.b16 %v453
    %v531 = vunpack.c.l.b16 %v454
    %v532 = vunpack.c.h.b16 %v454
    %v533 = vunpack.c.l.b16 %v455
    %v534 = vunpack.c.h.b16 %v455
    %v535 = vunpack.c.l.b16 %v456
    %v536 = vunpack.c.h.b16 %v456
    %v537 = vunpack.c.l.b16 %v457
    %v538 = vunpack.c.h.b16 %v457
    %v539 = vunpack.c.l.b16 %v458
    %v540 = vunpack.c.h.b16 %v458
    %v541 = vunpack.c.l.b16 %v459
    %v542 = vunpack.c.h.b16 %v459
    %v543 = vunpack.c.l.b16 %v460
    %v544 = vunpack.c.h.b16 %v460
    %v545 = vunpack.c.l.b16 %v461
    %v546 = vunpack.c.h.b16 %v461
    %v547 = vunpack.c.l.b16 %v462
    %v548 = vunpack.c.h.b16 %v462
    %v549 = vunpack.c.l.b16 %v463
    %v550 = vunpack.c.h.b16 %v463
    %v551 = vunpack.c.l.b16 %v464
    %v552 = vunpack.c.h.b16 %v464
    %v553 = vunpack.c.l.b16 %v465
    %v554 = vunpack.c.h.b16 %v465
    %v555 = vunpack.c.l.b16 %v466
    %v556 = vunpack.c.h.b16 %v466
    %v557 = vunpack.c.l.b16 %v467
    %v558 = vunpack.c.h.b16 %v467
    %v559 = vunpack.c.l.b16 %v468
    %v560 = vunpack.c.h.b16 %v468
    %v561 = vunpack.c.l.b16 %v469
    %v562 = vunpack.c.h.b16 %v469
    %v563 = vunpack.c.l.b16 %v470
    %v564 = vunpack.c.h.b16 %v470
    %v565 = vunpack.c.l.b16 %v471
    %v566 = vunpack.c.h.b16 %v471
    %v567 = vunpack.c.l.b16 %v472
    %v568 = vunpack.c.h.b16 %v472
    %v569 = vunpack.c.l.b16 %v473
    %v570 = vunpack.c.h.b16 %v473
    %v571 = vunpack.c.l.b16 %v474
    %v572 = vunpack.c.h.b16 %v474
    %v573 = vunpack.c.l.b16 %v475
    %v574 = vunpack.c.h.b16 %v475
    %v575 = vunpack.c.l.b16 %v476
    %v576 = vunpack.c.h.b16 %v476
    %v577 = vunpack.c.l.b16 %v477
    %v578 = vunpack.c.h.b16 %v477
    %v579 = vunpack.c.l.b16 %v478
    %v580 = vunpack.c.h.b16 %v478
    %v581 = vunpack.c.l.b16 %v479
    %v582 = vunpack.c.h.b16 %v479
    %v583 = vunpack.c.l.b16 %v480
    %v584 = vunpack.c.h.b16 %v480
    %v585 = vunpack.c.l.b16 %v481
    %v586 = vunpack.c.h.b16 %v481
    %v587 = vunpack.c.l.b16 %v482
    %v588 = vunpack.c.h.b16 %v482
    %v589 = vunpack.c.l.b16 %v483
    %v590 = vunpack.c.h.b16 %v483
    %v591 = vunpack.c.l.b16 %v484
    %v592 = vunpack.c.h.b16 %v484
    %v593 = vpack.c.b16 %v531, %v529
    %v594 = vpack.c.b16 %v532, %v530
    %v595 = vpack.c.b16 %v535, %v533
    %v596 = vpack.c.b16 %v536, %v534
    %v597 = vpack.c.b16 %v539, %v537
    %v598 = vpack.c.b16 %v540, %v538
    %v599 = vpack.c.b16 %v543, %v541
    %v600 = vpack.c.b16 %v544, %v542
    %v601 = vpack.c.b16 %v547, %v545
    %v602 = vpack.c.b16 %v548, %v546
    %v603 = vpack.c.b16 %v551, %v549
    %v604 = vpack.c.b16 %v552, %v550
    %v605 = vpack.c.b16 %v555, %v553
    %v606 = vpack.c.b16 %v556, %v554
    %v607 = vpack.c.b16 %v559, %v557
    %v608 = vpack.c.b16 %v560, %v558
    %v609 = vpack.c.b16 %v563, %v561
    %v610 = vpack.c.b16 %v564, %v562
    %v611 = vpack.c.b16 %v567, %v565
    %v612 = vpack.c.b16 %v568, %v566
    %v613 = vpack.c.b16 %v571, %v569
    %v614 = vpack.c.b16 %v572, %v570
    %v615 = vpack.c.b16 %v575, %v573
    %v616 = vpack.c.b16 %v576, %v574
    %v617 = vpack.c.b16 %v579, %v577
    %v618 = vpack.c.b16 %v580, %v578
    %v619 = vpack.c.b16 %v583, %v581
    %v620 = vpack.c.b16 %v584, %v582
    %v621 = vpack.c.b16 %v587, %v585
    %v622 = vpack.c.b16 %v588, %v586
    %v623 = vpack.c.b16 %v591, %v589
    %v624 = vpack.c.b16 %v592, %v590
    %657 = vmatprep.subr.bf16.mxu0 %v594
    %658 = vmatpush1.bf16.msra.mxu0 %v593
    %659 = vmatprep.subr.bf16.mxu0 %v596
    %660 = vmatpush1.bf16.msra.mxu0 %v595
    %661 = vmatprep.subr.bf16.mxu0 %v598
    %662 = vmatpush1.bf16.msra.mxu0 %v597
    %663 = vmatprep.subr.bf16.mxu0 %v600
    %664 = vmatpush1.bf16.msra.mxu0 %v599
    %665 = vmatprep.subr.bf16.mxu0 %v602
    %666 = vmatpush1.bf16.msra.mxu0 %v601
    %667 = vmatprep.subr.bf16.mxu0 %v604
    %668 = vmatpush1.bf16.msra.mxu0 %v603
    %669 = vmatprep.subr.bf16.mxu0 %v606
    %670 = vmatpush1.bf16.msra.mxu0 %v605
    %671 = vmatprep.subr.bf16.mxu0 %v608
    %672 = vmatpush1.bf16.msra.mxu0 %v607
    %673 = vmatprep.subr.bf16.mxu0 %v610
    %674 = vmatpush1.bf16.msra.mxu0 %v609
    %675 = vmatprep.subr.bf16.mxu0 %v612
    %676 = vmatpush1.bf16.msra.mxu0 %v611
    %677 = vmatprep.subr.bf16.mxu0 %v614
    %678 = vmatpush1.bf16.msra.mxu0 %v613
    %679 = vmatprep.subr.bf16.mxu0 %v616
    %680 = vmatpush1.bf16.msra.mxu0 %v615
    %681 = vmatprep.subr.bf16.mxu0 %v618
    %682 = vmatpush1.bf16.msra.mxu0 %v617
    %683 = vmatprep.subr.bf16.mxu0 %v620
    %684 = vmatpush1.bf16.msra.mxu0 %v619
    %685 = vmatprep.subr.bf16.mxu0 %v622
    %686 = vmatpush1.bf16.msra.mxu0 %v621
    %687 = vmatprep.subr.bf16.mxu0 %v624
    %688 = vmatpush1.bf16.msra.mxu0 %v623
    %689 = vmatprep.mubr.bf16.mxu0 %v450
    %690 = vmatmul.mubr.bf16.gmra.mrb[0].mxu0 %v449
    %v691 = vpop.f32.mrb[0].mxu0
    %v692 = vadd.f32 %v490, %v691
    %v693 = vpop.f32.mrb[0].mxu0
    %v694 = vadd.f32 %v494, %v693
    %v695 = vpop.f32.mrb[0].mxu0
    %v696 = vadd.f32 %v490, %v695
    %v697 = vpop.f32.mrb[0].mxu0
    %v698 = vadd.f32 %v494, %v697
    %699 = vdwg.mxu0
    %v700 = vmax.f32 %v692, 0.0
    %v701 = vmax.f32 %v694, 0.0
    %v702 = vmax.f32 %v696, 0.0
    %v703 = vmax.f32 %v698, 0.0
    %v704 = vld [vmem:[#allocation4 + $0x100] sm:$0xff]
    %v705 = vld [vmem:[#allocation4 + $0x108] sm:$0xff]
    %v706 = vld [vmem:[#allocation4 + $0x110] sm:$0xff]
    %v707 = vld [vmem:[#allocation4 + $0x118] sm:$0xff]
    %v708 = vld [vmem:[#allocation4 + $0x120] sm:$0xff]
    %v709 = vld [vmem:[#allocation4 + $0x128] sm:$0xff]
    %v710 = vld [vmem:[#allocation4 + $0x130] sm:$0xff]
    %v711 = vld [vmem:[#allocation4 + $0x138] sm:$0xff]
    %v712 = vld [vmem:[#allocation4 + $0x140] sm:$0xff]
    %v713 = vld [vmem:[#allocation4 + $0x148] sm:$0xff]
    %v714 = vld [vmem:[#allocation4 + $0x150] sm:$0xff]
    %v715 = vld [vmem:[#allocation4 + $0x158] sm:$0xff]
    %v716 = vld [vmem:[#allocation4 + $0x160] sm:$0xff]
    %v717 = vld [vmem:[#allocation4 + $0x168] sm:$0xff]
    %v718 = vld [vmem:[#allocation4 + $0x170] sm:$0xff]
    %v719 = vld [vmem:[#allocation4 + $0x178] sm:$0xff]
    %v720 = vld [vmem:[#allocation4 + $0x180] sm:$0xff]
    %v721 = vld [vmem:[#allocation4 + $0x188] sm:$0xff]
    %v722 = vld [vmem:[#allocation4 + $0x190] sm:$0xff]
    %v723 = vld [vmem:[#allocation4 + $0x198] sm:$0xff]
    %v724 = vld [vmem:[#allocation4 + $0x1a0] sm:$0xff]
    %v725 = vld [vmem:[#allocation4 + $0x1a8] sm:$0xff]
    %v726 = vld [vmem:[#allocation4 + $0x1b0] sm:$0xff]
    %v727 = vld [vmem:[#allocation4 + $0x1b8] sm:$0xff]
    %v728 = vld [vmem:[#allocation4 + $0x1c0] sm:$0xff]
    %v729 = vld [vmem:[#allocation4 + $0x1c8] sm:$0xff]
    %v730 = vld [vmem:[#allocation4 + $0x1d0] sm:$0xff]
    %v731 = vld [vmem:[#allocation4 + $0x1d8] sm:$0xff]
    %v732 = vld [vmem:[#allocation4 + $0x1e0] sm:$0xff]
    %v733 = vld [vmem:[#allocation4 + $0x1e8] sm:$0xff]
    %v734 = vld [vmem:[#allocation4 + $0x1f0] sm:$0xff]
    %v735 = vld [vmem:[#allocation4 + $0x1f8] sm:$0xff]
    %v736 = vld [vmem:[%s5 + $0x7] sm:$0x3]
    %v738 = vlaneseq
    %v739 = vshrl.u32 %v738, 7
    %v740 = vsub.s32 0, %v739
    %v741 = vrot.slane %v736, %v740
    %v742 = vlaneseq
    %v743 = vshrl.u32 %v742, 7
    %v744 = vsub.s32 1, %v743
    %v745 = vrot.slane %v736, %v744
    %v780 = vunpack.c.l.b16 %v704
    %v781 = vunpack.c.h.b16 %v704
    %v782 = vunpack.c.l.b16 %v705
    %v783 = vunpack.c.h.b16 %v705
    %v784 = vunpack.c.l.b16 %v706
    %v785 = vunpack.c.h.b16 %v706
    %v786 = vunpack.c.l.b16 %v707
    %v787 = vunpack.c.h.b16 %v707
    %v788 = vunpack.c.l.b16 %v708
    %v789 = vunpack.c.h.b16 %v708
    %v790 = vunpack.c.l.b16 %v709
    %v791 = vunpack.c.h.b16 %v709
    %v792 = vunpack.c.l.b16 %v710
    %v793 = vunpack.c.h.b16 %v710
    %v794 = vunpack.c.l.b16 %v711
    %v795 = vunpack.c.h.b16 %v711
    %v796 = vunpack.c.l.b16 %v712
    %v797 = vunpack.c.h.b16 %v712
    %v798 = vunpack.c.l.b16 %v713
    %v799 = vunpack.c.h.b16 %v713
    %v800 = vunpack.c.l.b16 %v714
    %v801 = vunpack.c.h.b16 %v714
    %v802 = vunpack.c.l.b16 %v715
    %v803 = vunpack.c.h.b16 %v715
    %v804 = vunpack.c.l.b16 %v716
    %v805 = vunpack.c.h.b16 %v716
    %v806 = vunpack.c.l.b16 %v717
    %v807 = vunpack.c.h.b16 %v717
    %v808 = vunpack.c.l.b16 %v718
    %v809 = vunpack.c.h.b16 %v718
    %v810 = vunpack.c.l.b16 %v719
    %v811 = vunpack.c.h.b16 %v719
    %v812 = vunpack.c.l.b16 %v720
    %v813 = vunpack.c.h.b16 %v720
    %v814 = vunpack.c.l.b16 %v721
    %v815 = vunpack.c.h.b16 %v721
    %v816 = vunpack.c.l.b16 %v722
    %v817 = vunpack.c.h.b16 %v722
    %v818 = vunpack.c.l.b16 %v723
    %v819 = vunpack.c.h.b16 %v723
    %v820 = vunpack.c.l.b16 %v724
    %v821 = vunpack.c.h.b16 %v724
    %v822 = vunpack.c.l.b16 %v725
    %v823 = vunpack.c.h.b16 %v725
    %v824 = vunpack.c.l.b16 %v726
    %v825 = vunpack.c.h.b16 %v726
    %v826 = vunpack.c.l.b16 %v727
    %v827 = vunpack.c.h.b16 %v727
    %v828 = vunpack.c.l.b16 %v728
    %v829 = vunpack.c.h.b16 %v728
    %v830 = vunpack.c.l.b16 %v729
    %v831 = vunpack.c.h.b16 %v729
    %v832 = vunpack.c.l.b16 %v730
    %v833 = vunpack.c.h.b16 %v730
    %v834 = vunpack.c.l.b16 %v731
    %v835 = vunpack.c.h.b16 %v731
    %v836 = vunpack.c.l.b16 %v732
    %v837 = vunpack.c.h.b16 %v732
    %v838 = vunpack.c.l.b16 %v733
    %v839 = vunpack.c.h.b16 %v733
    %v840 = vunpack.c.l.b16 %v734
    %v841 = vunpack.c.h.b16 %v734
    %v842 = vunpack.c.l.b16 %v735
    %v843 = vunpack.c.h.b16 %v735
    %v844 = vpack.c.b16 %v782, %v780
    %v845 = vpack.c.b16 %v783, %v781
    %v846 = vpack.c.b16 %v786, %v784
    %v847 = vpack.c.b16 %v787, %v785
    %v848 = vpack.c.b16 %v790, %v788
    %v849 = vpack.c.b16 %v791, %v789
    %v850 = vpack.c.b16 %v794, %v792
    %v851 = vpack.c.b16 %v795, %v793
    %v852 = vpack.c.b16 %v798, %v796
    %v853 = vpack.c.b16 %v799, %v797
    %v854 = vpack.c.b16 %v802, %v800
    %v855 = vpack.c.b16 %v803, %v801
    %v856 = vpack.c.b16 %v806, %v804
    %v857 = vpack.c.b16 %v807, %v805
    %v858 = vpack.c.b16 %v810, %v808
    %v859 = vpack.c.b16 %v811, %v809
    %v860 = vpack.c.b16 %v814, %v812
    %v861 = vpack.c.b16 %v815, %v813
    %v862 = vpack.c.b16 %v818, %v816
    %v863 = vpack.c.b16 %v819, %v817
    %v864 = vpack.c.b16 %v822, %v820
    %v865 = vpack.c.b16 %v823, %v821
    %v866 = vpack.c.b16 %v826, %v824
    %v867 = vpack.c.b16 %v827, %v825
    %v868 = vpack.c.b16 %v830, %v828
    %v869 = vpack.c.b16 %v831, %v829
    %v870 = vpack.c.b16 %v834, %v832
    %v871 = vpack.c.b16 %v835, %v833
    %v872 = vpack.c.b16 %v838, %v836
    %v873 = vpack.c.b16 %v839, %v837
    %v874 = vpack.c.b16 %v842, %v840
    %v875 = vpack.c.b16 %v843, %v841
    %908 = vmatprep.subr.bf16.mxu0 %v845
    %909 = vmatpush1.bf16.msra.mxu0 %v844
    %910 = vmatprep.subr.bf16.mxu0 %v847
    %911 = vmatpush1.bf16.msra.mxu0 %v846
    %912 = vmatprep.subr.bf16.mxu0 %v849
    %913 = vmatpush1.bf16.msra.mxu0 %v848
    %914 = vmatprep.subr.bf16.mxu0 %v851
    %915 = vmatpush1.bf16.msra.mxu0 %v850
    %916 = vmatprep.subr.bf16.mxu0 %v853
    %917 = vmatpush1.bf16.msra.mxu0 %v852
    %918 = vmatprep.subr.bf16.mxu0 %v855
    %919 = vmatpush1.bf16.msra.mxu0 %v854
    %920 = vmatprep.subr.bf16.mxu0 %v857
    %921 = vmatpush1.bf16.msra.mxu0 %v856
    %922 = vmatprep.subr.bf16.mxu0 %v859
    %923 = vmatpush1.bf16.msra.mxu0 %v858
    %924 = vmatprep.subr.bf16.mxu0 %v861
    %925 = vmatpush1.bf16.msra.mxu0 %v860
    %926 = vmatprep.subr.bf16.mxu0 %v863
    %927 = vmatpush1.bf16.msra.mxu0 %v862
    %928 = vmatprep.subr.bf16.mxu0 %v865
    %929 = vmatpush1.bf16.msra.mxu0 %v864
    %930 = vmatprep.subr.bf16.mxu0 %v867
    %931 = vmatpush1.bf16.msra.mxu0 %v866
    %932 = vmatprep.subr.bf16.mxu0 %v869
    %933 = vmatpush1.bf16.msra.mxu0 %v868
    %934 = vmatprep.subr.bf16.mxu0 %v871
    %935 = vmatpush1.bf16.msra.mxu0 %v870
    %936 = vmatprep.subr.bf16.mxu0 %v873
    %937 = vmatpush1.bf16.msra.mxu0 %v872
    %938 = vmatprep.subr.bf16.mxu0 %v875
    %939 = vmatpush1.bf16.msra.mxu0 %v874
    %940 = vmatprep.mubr.bf16.mxu0 %v452
    %941 = vmatmul.mubr.bf16.gmra.mrb[0].mxu0 %v451
    %v942 = vpop.f32.mrb[0].mxu0
    %v943 = vadd.f32 %v741, %v942
    %v944 = vpop.f32.mrb[0].mxu0
    %v945 = vadd.f32 %v745, %v944
    %v946 = vpop.f32.mrb[0].mxu0
    %v947 = vadd.f32 %v741, %v946
    %v948 = vpop.f32.mrb[0].mxu0
    %v949 = vadd.f32 %v745, %v948
    %950 = vdwg.mxu0
    %v951 = vmax.f32 %v943, 0.0
    %v952 = vmax.f32 %v945, 0.0
    %v953 = vmax.f32 %v947, 0.0
    %v954 = vmax.f32 %v949, 0.0
    %v955 = vpack.c.bf16 %v702, %v700
    %v956 = vpack.c.bf16 %v703, %v701
    %v957 = vld [vmem:[#allocation6] sm:$0xf]
    %v958 = vld [vmem:[#allocation6 + $0x4] sm:$0xf]
    %v959 = vld [vmem:[#allocation6 + $0x8] sm:$0xf]
    %v960 = vld [vmem:[#allocation6 + $0xc] sm:$0xf]
    %v961 = vld [vmem:[#allocation6 + $0x10] sm:$0xf]
    %v962 = vld [vmem:[#allocation6 + $0x14] sm:$0xf]
    %v963 = vld [vmem:[#allocation6 + $0x18] sm:$0xf]
    %v964 = vld [vmem:[#allocation6 + $0x1c] sm:$0xf]
    %v965 = vld [vmem:[#allocation6 + $0x20] sm:$0xf]
    %v966 = vld [vmem:[#allocation6 + $0x24] sm:$0xf]
    %v967 = vld [vmem:[#allocation6 + $0x28] sm:$0xf]
    %v968 = vld [vmem:[#allocation6 + $0x2c] sm:$0xf]
    %v969 = vld [vmem:[#allocation6 + $0x30] sm:$0xf]
    %v970 = vld [vmem:[#allocation6 + $0x34] sm:$0xf]
    %v971 = vld [vmem:[#allocation6 + $0x38] sm:$0xf]
    %v972 = vld [vmem:[#allocation6 + $0x3c] sm:$0xf]
    %v973 = vld [vmem:[#allocation6 + $0x40] sm:$0xf]
    %v974 = vld [vmem:[#allocation6 + $0x44] sm:$0xf]
    %v975 = vld [vmem:[#allocation6 + $0x48] sm:$0xf]
    %v976 = vld [vmem:[#allocation6 + $0x4c] sm:$0xf]
    %v977 = vld [vmem:[#allocation6 + $0x50] sm:$0xf]
    %v978 = vld [vmem:[#allocation6 + $0x54] sm:$0xf]
    %v979 = vld [vmem:[#allocation6 + $0x58] sm:$0xf]
    %v980 = vld [vmem:[#allocation6 + $0x5c] sm:$0xf]
    %v981 = vld [vmem:[#allocation6 + $0x60] sm:$0xf]
    %v982 = vld [vmem:[#allocation6 + $0x64] sm:$0xf]
    %v983 = vld [vmem:[#allocation6 + $0x68] sm:$0xf]
    %v984 = vld [vmem:[#allocation6 + $0x6c] sm:$0xf]
    %v985 = vld [vmem:[#allocation6 + $0x70] sm:$0xf]
    %v986 = vld [vmem:[#allocation6 + $0x74] sm:$0xf]
    %v987 = vld [vmem:[#allocation6 + $0x78] sm:$0xf]
    %v988 = vld [vmem:[#allocation6 + $0x7c] sm:$0xf]
    %v989 = vld [vmem:[%s5 + $0xb] sm:$0x1]
    %v991 = vlaneseq
    %v992 = vshrl.u32 %v991, 7
    %v993 = vsub.s32 0, %v992
    %v994 = vrot.slane %v989, %v993
    %v1028 = vunpack.c.l.b16 %v957
    %v1029 = vunpack.c.l.b16 %v958
    %v1030 = vunpack.c.l.b16 %v959
    %v1031 = vunpack.c.l.b16 %v960
    %v1032 = vunpack.c.l.b16 %v961
    %v1033 = vunpack.c.l.b16 %v962
    %v1034 = vunpack.c.l.b16 %v963
    %v1035 = vunpack.c.l.b16 %v964
    %v1036 = vunpack.c.l.b16 %v965
    %v1037 = vunpack.c.l.b16 %v966
    %v1038 = vunpack.c.l.b16 %v967
    %v1039 = vunpack.c.l.b16 %v968
    %v1040 = vunpack.c.l.b16 %v969
    %v1041 = vunpack.c.l.b16 %v970
    %v1042 = vunpack.c.l.b16 %v971
    %v1043 = vunpack.c.l.b16 %v972
    %v1044 = vunpack.c.l.b16 %v973
    %v1045 = vunpack.c.l.b16 %v974
    %v1046 = vunpack.c.l.b16 %v975
    %v1047 = vunpack.c.l.b16 %v976
    %v1048 = vunpack.c.l.b16 %v977
    %v1049 = vunpack.c.l.b16 %v978
    %v1050 = vunpack.c.l.b16 %v979
    %v1051 = vunpack.c.l.b16 %v980
    %v1052 = vunpack.c.l.b16 %v981
    %v1053 = vunpack.c.l.b16 %v982
    %v1054 = vunpack.c.l.b16 %v983
    %v1055 = vunpack.c.l.b16 %v984
    %v1056 = vunpack.c.l.b16 %v985
    %v1057 = vunpack.c.l.b16 %v986
    %v1058 = vunpack.c.l.b16 %v987
    %v1059 = vunpack.c.l.b16 %v988
    %v1060 = vpack.c.b16 %v1029, %v1028
    %v1061 = vpack.c.b16 %v1031, %v1030
    %v1062 = vpack.c.b16 %v1033, %v1032
    %v1063 = vpack.c.b16 %v1035, %v1034
    %v1064 = vpack.c.b16 %v1037, %v1036
    %v1065 = vpack.c.b16 %v1039, %v1038
    %v1066 = vpack.c.b16 %v1041, %v1040
    %v1067 = vpack.c.b16 %v1043, %v1042
    %v1068 = vpack.c.b16 %v1045, %v1044
    %v1069 = vpack.c.b16 %v1047, %v1046
    %v1070 = vpack.c.b16 %v1049, %v1048
    %v1071 = vpack.c.b16 %v1051, %v1050
    %v1072 = vpack.c.b16 %v1053, %v1052
    %v1073 = vpack.c.b16 %v1055, %v1054
    %v1074 = vpack.c.b16 %v1057, %v1056
    %v1075 = vpack.c.b16 %v1059, %v1058
    %1092 = vmatprep.subr.bf16.mxu0 0
    %1093 = vmatpush1.bf16.msra.mxu0 %v1060
    %1094 = vmatprep.subr.bf16.mxu0 0
    %1095 = vmatpush1.bf16.msra.mxu0 %v1061
    %1096 = vmatprep.subr.bf16.mxu0 0
    %1097 = vmatpush1.bf16.msra.mxu0 %v1062
    %1098 = vmatprep.subr.bf16.mxu0 0
    %1099 = vmatpush1.bf16.msra.mxu0 %v1063
    %1100 = vmatprep.subr.bf16.mxu0 0
    %1101 = vmatpush1.bf16.msra.mxu0 %v1064
    %1102 = vmatprep.subr.bf16.mxu0 0
    %1103 = vmatpush1.bf16.msra.mxu0 %v1065
    %1104 = vmatprep.subr.bf16.mxu0 0
    %1105 = vmatpush1.bf16.msra.mxu0 %v1066
    %1106 = vmatprep.subr.bf16.mxu0 0
    %1107 = vmatpush1.bf16.msra.mxu0 %v1067
    %1108 = vmatprep.subr.bf16.mxu0 0
    %1109 = vmatpush1.bf16.msra.mxu0 %v1068
    %1110 = vmatprep.subr.bf16.mxu0 0
    %1111 = vmatpush1.bf16.msra.mxu0 %v1069
    %1112 = vmatprep.subr.bf16.mxu0 0
    %1113 = vmatpush1.bf16.msra.mxu0 %v1070
    %1114 = vmatprep.subr.bf16.mxu0 0
    %1115 = vmatpush1.bf16.msra.mxu0 %v1071
    %1116 = vmatprep.subr.bf16.mxu0 0
    %1117 = vmatpush1.bf16.msra.mxu0 %v1072
    %1118 = vmatprep.subr.bf16.mxu0 0
    %1119 = vmatpush1.bf16.msra.mxu0 %v1073
    %1120 = vmatprep.subr.bf16.mxu0 0
    %1121 = vmatpush1.bf16.msra.mxu0 %v1074
    %1122 = vmatprep.subr.bf16.mxu0 0
    %1123 = vmatpush1.bf16.msra.mxu0 %v1075
    %1124 = vmatprep.mubr.bf16.mxu0 %v956
    %1125 = vmatmul.mubr.bf16.gmra.mrb[0].mxu0 %v955
    %v1126 = vpop.f32.mrb[0].mxu0
    %v1127 = vadd.f32 %v994, %v1126
    %v1128 = vpop.f32.mrb[0].mxu0
    %v1129 = vpop.f32.mrb[0].mxu0
    %v1130 = vadd.f32 %v994, %v1129
    %v1131 = vpop.f32.mrb[0].mxu0
    %1132 = vdwg.mxu0
    %v1133 = vpack.c.bf16 %v1130, %v1127
    %v1135 = vunpack.c.l.b16 %v1133
    %v1136 = vunpack.c.h.b16 %v1133
    %v1137 = vpack.c.b16 %v1135, %v1135
    %v1138 = vpack.c.b16 %v1136, %v1136
    %1141 = vst [vmem:[%s6] sm:$0xf] %v1137
    %1142 = vst [vmem:[%s6 + $0x4] sm:$0xf] %v1138
    %v1143 = vld [vmem:[%s5 + $0x9] sm:$0x3]
    %v1145 = vlaneseq
    %v1146 = vshrl.u32 %v1145, 7
    %v1147 = vsub.s32 0, %v1146
    %v1148 = vrot.slane %v1143, %v1147
    %v1149 = vlaneseq
    %v1150 = vshrl.u32 %v1149, 7
    %v1151 = vsub.s32 1, %v1150
    %v1152 = vrot.slane %v1143, %v1151
    %v1155 = vmul.f32 %v951, %v1148
    %v1156 = vmul.f32 %v952, %v1152
    %v1157 = vmul.f32 %v953, %v1148
    %v1158 = vmul.f32 %v954, %v1152
    %v1159 = vadd.f32 %v1155, %v1156
    %1160 = vadd.xlane.f32.xlu0 %v1159
    %v1161 = vpop.xlane.xlu0 %1160
    %v1162 = vadd.f32 %v1157, %v1158
    %1163 = vadd.xlane.f32.xlu0 %v1162
    %v1164 = vpop.xlane.xlu0 %1163
    %v1165 = vld [vmem:[%s5 + $0xc] sm:$0x1]
    %v1167 = vlaneseq
    %v1168 = vshrl.u32 %v1167, 7
    %v1169 = vsub.s32 0, %v1168
    %v1170 = vrot.slane %v1165, %v1169
    %v1172 = vadd.f32 %v1161, %v1170
    %v1173 = vadd.f32 %v1164, %v1170
    %1175 = vset.pattern.permute.xlu0 0
    %1176 = vperm.xlu0 %1175, %v1172
    %v1177 = vpop.permute.xlu0 %1176
    %1180 = vset.pattern.permute.xlu0 0
    %1181 = vperm.xlu0 %1180, %v1173
    %v1182 = vpop.permute.xlu0 %1181
    %vm1184 = vcmask 64512
    %1185 = vst.msk [vmem:[%s7] sm:$0xff] %vm1184, %v1177
    %1186 = vst.msk [vmem:[%s7 + $0x8] sm:$0xff] %vm1184, %v1182
    // Predicated region
    $region38: #{actor_critic_forward.1} parent=1 // pred_check
      _
    $region39: #{actor_critic_forward.1} parent=1 // pred_check_branch
      %1188 = sbr.rel (0) target = $region41
    $region40: #{actor_critic_forward.1} parent=1 // pred_region
      _
    $region41: #{actor_critic_forward.1} parent=1 // pred_fallthru
      _
    // Predicated region
    $region42: #{actor_critic_forward.1} parent=1 // pred_check
      _
    $region43: #{actor_critic_forward.1} parent=1 // pred_check_branch
      %1190 = sbr.rel (0) target = $region45
    $region44: #{actor_critic_forward.1} parent=1 // pred_region
      _
    $region45: #{actor_critic_forward.1} parent=1 // pred_fallthru
      _
    // Predicated region
    $region46: #{actor_critic_forward.1} parent=1 // pred_check
      _
    $region47: #{actor_critic_forward.1} parent=1 // pred_check_branch
      %1192 = sbr.rel (0) target = $region49
    $region48: #{actor_critic_forward.1} parent=1 // pred_region
      _
    $region49: #{actor_critic_forward.1} parent=1 // pred_fallthru
      _
    // Predicated region
    $region50: #{actor_critic_forward.1} parent=1 // pred_check
      _
    $region51: #{actor_critic_forward.1} parent=1 // pred_check_branch
      %1194 = sbr.rel (0) target = $region53
    $region52: #{actor_critic_forward.1} parent=1 // pred_region
      _
    $region53: #{actor_critic_forward.1} parent=1 // pred_fallthru
      _
    %1195 = vsyncpa [#allocation3], 1
    %1196 = vsyncpa [#allocation5], 1

</llo_original>
